<compile_context>
chip_gen: v7x
topology: tpu7x:2x2x1
jax: 0.10.0
libtpu: 0.0.40
codegen_flags: <defaults>
</compile_context>

<pallas_src>
import jax
import jax.numpy as jnp
from jax.experimental import pallas as pl
from jax.experimental.pallas import tpu as pltpu


# ---------------------------------------------------------------------------
# Single fused kernel: node_encoder -> n_layers x (RGCNConv + ReLU) -> pool+fc
# ---------------------------------------------------------------------------
def _make_fused_kernel(n_layers, num_rel, hidden):
    H, R = hidden, num_rel

    def kernel(x_ref, adj_ref, pool_ref,
               node_w_ref, node_b_ref,
               wcat_ref, bias_ref,
               fc_w_ref, fc_b_ref,
               out_ref):
        # ---- node encoder: h = x @ W_node + b_node ------------------------
        h = (jnp.dot(x_ref[...], node_w_ref[...],
                     preferred_element_type=jnp.float32)
             + node_b_ref[...])

        adj = adj_ref[...]  # (R, N, N); adj[r, dst, src] already * edge_atten

        # ---- n_layers x (RGCNConv + ReLU + dropout[eval = identity]) -------
        for l in range(n_layers):                      # static unroll
            # Packed matmul over relations: one lane-dense MXU push.
            #   m = h @ [W_root | W_rel_0 | ... | W_rel_{R-1}]  -> (N, (R+1)*H)
            m = jnp.dot(h, wcat_ref[l], preferred_element_type=jnp.float32)
            acc = m[:, 0:H] + bias_ref[l]              # root/self term + bias
            for r in range(R):                         # VMEM-resident accumulate
                acc = acc + jnp.dot(adj[r],
                                    m[:, (r + 1) * H:(r + 2) * H],
                                    preferred_element_type=jnp.float32)
            h = jnp.maximum(acc, 0.0)                  # fused ReLU

        # ---- global_add_pool + fc_out on the VMEM-resident h ---------------
        pooled = jnp.dot(pool_ref[...], h, preferred_element_type=jnp.float32)
        out_ref[...] = (jnp.dot(pooled, fc_w_ref[...],
                                preferred_element_type=jnp.float32)
                        + fc_b_ref[...])

    return kernel


# ---------------------------------------------------------------------------
# Forward pass wrapper (eval mode).
# ---------------------------------------------------------------------------
def rgcn_forward(params, x, adj, pool_mat):
    num_rel = adj.shape[0]
    hidden = params["node_w"].shape[1]
    n_layers = len(params["convs"])
    num_class = params["fc_w"].shape[1]
    bsz = pool_mat.shape[0]
    N = x.shape[0]

    # Pack per-layer weights once: [W_root | W_rel_0 | ... | W_rel_{R-1}]
    wcat = jnp.stack([
        jnp.concatenate(
            [layer["w_root"]] + [layer["w_rel"][r] for r in range(num_rel)],
            axis=1)
        for layer in params["convs"]
    ])                                                            # (L, H, (R+1)*H)
    bias = jnp.stack([layer["bias"] for layer in params["convs"]])  # (L, 1, H)

    kernel = _make_fused_kernel(n_layers, num_rel, hidden)

    # Rough advisory cost (helps XLA schedule around the custom call).
    flops = 2 * (
        N * x.shape[1] * hidden                               # node encoder
        + n_layers * (N * hidden * (num_rel + 1) * hidden     # packed transforms
                      + num_rel * N * N * hidden)             # adjacency products
        + bsz * N * hidden                                     # pooling
        + bsz * hidden * num_class                             # fc_out
    )
    bytes_accessed = 4 * (x.size + adj.size + pool_mat.size + wcat.size
                          + bias.size + params["node_w"].size + params["node_b"].size
                          + params["fc_w"].size + params["fc_b"].size
                          + bsz * num_class)

    return pl.pallas_call(
        kernel,
        out_shape=jax.ShapeDtypeStruct((bsz, num_class), jnp.float32),
        cost_estimate=pl.CostEstimate(flops=flops, transcendentals=0,
                                      bytes_accessed=bytes_accessed),
        compiler_params=pltpu.CompilerParams(vmem_limit_bytes=32 * 1024 * 1024),
    )(x, adj, pool_mat,
      params["node_w"], params["node_b"],
      wcat, bias,
      params["fc_w"], params["fc_b"])


# ---------------------------------------------------------------------------
# Parameter init (deterministic, PyTorch-Linear-style uniform).
# ---------------------------------------------------------------------------
def _init_linear(key, fan_in, fan_out):
    kw, kb = jax.random.split(key)
    bound = 1.0 / jnp.sqrt(float(fan_in))
    w = jax.random.uniform(kw, (fan_in, fan_out), jnp.float32, -bound, bound)
    b = jax.random.uniform(kb, (1, fan_out), jnp.float32, -bound, bound)
    return w, b


def init_rgcn_params(key, x_dim, edge_attr_dim, hidden, num_class, n_layers, num_rel):
    keys = jax.random.split(key, 3 + n_layers)
    node_w, node_b = _init_linear(keys[0], x_dim, hidden)
    # edge encoder params exist in the module but do not affect the forward
    # output of standard RGCNConv; kept for parameter parity only.
    edge_w, edge_b = _init_linear(keys[1], edge_attr_dim, hidden)
    fc_w, fc_b = _init_linear(keys[2], hidden, num_class)
    convs = []
    for i in range(n_layers):
        k_rel, k_root, k_bias = jax.random.split(keys[3 + i], 3)
        bound = 1.0 / jnp.sqrt(float(hidden))
        convs.append(
            dict(
                w_rel=jax.random.uniform(
                    k_rel, (num_rel, hidden, hidden), jnp.float32, -bound, bound),
                w_root=jax.random.uniform(
                    k_root, (hidden, hidden), jnp.float32, -bound, bound),
                bias=jax.random.uniform(
                    k_bias, (1, hidden), jnp.float32, -bound, bound),
            )
        )
    return dict(
        node_w=node_w, node_b=node_b,
        edge_w=edge_w, edge_b=edge_b,
        fc_w=fc_w, fc_b=fc_b,
        convs=convs,
    )


# ---------------------------------------------------------------------------
if __name__ == "__main__":
    # model config
    x_dim, edge_attr_dim = 7, 5
    hidden, n_layers, num_rel = 32, 2, 3
    num_class = 3                       # => fc_out output dim = 3

    # graph sizes
    N, E, B = 16, 40, 2                 # 16 nodes, 40 edges, 2 graphs

    key = jax.random.PRNGKey(0)
    kx, ke, kei, ket, ka, kp = jax.random.split(key, 6)

    x = jax.random.normal(kx, (N, x_dim), jnp.float32)
    edge_attr = jax.random.normal(ke, (E, edge_attr_dim), jnp.float32)
    edge_index = jax.random.randint(kei, (2, E), 0, N)          # [src; dst]
    edge_type = jax.random.randint(ket, (E,), 0, num_rel)
    edge_atten = jax.random.uniform(ka, (E, 1), jnp.float32)
    batch = jnp.concatenate([jnp.zeros(N // 2, jnp.int32),
                             jnp.ones(N - N // 2, jnp.int32)])

    # --- plain-JAX glue: densify the sparse graph structure -----------------
    # TODO(synk): data-dependent scatter (edge list -> dense adj) stays in XLA;
    # a Pallas scatter at these sizes would only add launch overhead.
    src, dst = edge_index[0], edge_index[1]
    adj = jnp.zeros((num_rel, N, N), jnp.float32).at[
        edge_type, dst, src
    ].add(edge_atten[:, 0])                                     # adj[r, dst, src]
    pool_mat = (batch[None, :] == jnp.arange(B)[:, None]).astype(jnp.float32)

    params = init_rgcn_params(
        kp, x_dim, edge_attr_dim, hidden, num_class, n_layers, num_rel
    )

    fwd = jax.jit(rgcn_forward)
    out = fwd(params, x, adj, pool_mat)
    out = jax.block_until_ready(out)
    assert out.shape == (B, num_class)
    print("KERNEL_OK")
</pallas_src>

<mosaic_0001>
module attributes {stable_mosaic.version = 11 : i64} {
  func.func @kernel(%arg0: memref<16x7xf32, #tpu.memory_space<vmem>>, %arg1: memref<3x16x16xf32, #tpu.memory_space<vmem>>, %arg2: memref<2x16xf32, #tpu.memory_space<vmem>>, %arg3: memref<7x32xf32, #tpu.memory_space<vmem>>, %arg4: memref<1x32xf32, #tpu.memory_space<vmem>>, %arg5: memref<2x32x128xf32, #tpu.memory_space<vmem>>, %arg6: memref<2x1x32xf32, #tpu.memory_space<vmem>>, %arg7: memref<32x3xf32, #tpu.memory_space<vmem>>, %arg8: memref<1x3xf32, #tpu.memory_space<vmem>>, %arg9: memref<2x3xf32, #tpu.memory_space<vmem>>) attributes {dimension_semantics = [], scalar_prefetch = 0 : i64, scratch_operands = 0 : i64, tpu.core_type = #tpu.core_type<tc>} {
    %c0 = arith.constant 0 : index
    %c0_0 = arith.constant 0 : index
    %0 = vector.load %arg0[%c0, %c0_0] : memref<16x7xf32, #tpu.memory_space<vmem>>, vector<16x7xf32>
    %c0_1 = arith.constant 0 : index
    %c0_2 = arith.constant 0 : index
    %1 = vector.load %arg3[%c0_1, %c0_2] : memref<7x32xf32, #tpu.memory_space<vmem>>, vector<7x32xf32>
    %cst = arith.constant dense<0.000000e+00> : vector<16x32xf32>
    %2 = tpu.matmul %0, %1, %cst {dimension_numbers = #tpu.dot_dimension_numbers<[1], [0], [0], [1], [0, 0, 1, 1], [], []>} : vector<16x7xf32>, vector<7x32xf32>, vector<16x32xf32> -> vector<16x32xf32>
    %c0_3 = arith.constant 0 : index
    %c0_4 = arith.constant 0 : index
    %3 = vector.load %arg4[%c0_3, %c0_4] : memref<1x32xf32, #tpu.memory_space<vmem>>, vector<1x32xf32>
    %4 = vector.broadcast %3 : vector<1x32xf32> to vector<16x32xf32>
    %5 = arith.addf %2, %4 : vector<16x32xf32>
    %c0_5 = arith.constant 0 : index
    %c0_6 = arith.constant 0 : index
    %c0_7 = arith.constant 0 : index
    %6 = vector.load %arg1[%c0_5, %c0_6, %c0_7] : memref<3x16x16xf32, #tpu.memory_space<vmem>>, vector<3x16x16xf32>
    %c0_8 = arith.constant 0 : index
    %c0_9 = arith.constant 0 : index
    %c0_10 = arith.constant 0 : index
    %7 = vector.load %arg5[%c0_8, %c0_9, %c0_10] : memref<2x32x128xf32, #tpu.memory_space<vmem>>, vector<1x32x128xf32>
    %8 = vector.shape_cast %7 : vector<1x32x128xf32> to vector<32x128xf32>
    %cst_11 = arith.constant dense<0.000000e+00> : vector<16x128xf32>
    %9 = tpu.matmul %5, %8, %cst_11 {dimension_numbers = #tpu.dot_dimension_numbers<[1], [0], [0], [1], [0, 0, 1, 1], [], []>} : vector<16x32xf32>, vector<32x128xf32>, vector<16x128xf32> -> vector<16x128xf32>
    %10 = vector.extract_strided_slice %9 {offsets = [0, 0], sizes = [16, 32], strides = [1, 1]} : vector<16x128xf32> to vector<16x32xf32>
    %c0_12 = arith.constant 0 : index
    %c0_13 = arith.constant 0 : index
    %c0_14 = arith.constant 0 : index
    %11 = vector.load %arg6[%c0_12, %c0_13, %c0_14] : memref<2x1x32xf32, #tpu.memory_space<vmem>>, vector<1x1x32xf32>
    %12 = vector.shape_cast %11 : vector<1x1x32xf32> to vector<1x32xf32>
    %13 = vector.broadcast %12 : vector<1x32xf32> to vector<16x32xf32>
    %14 = arith.addf %10, %13 : vector<16x32xf32>
    %15 = vector.extract_strided_slice %6 {offsets = [0, 0, 0], sizes = [1, 16, 16], strides = [1, 1, 1]} : vector<3x16x16xf32> to vector<1x16x16xf32>
    %16 = vector.shape_cast %15 : vector<1x16x16xf32> to vector<16x16xf32>
    %17 = vector.extract_strided_slice %9 {offsets = [0, 32], sizes = [16, 32], strides = [1, 1]} : vector<16x128xf32> to vector<16x32xf32>
    %cst_15 = arith.constant dense<0.000000e+00> : vector<16x32xf32>
    %18 = tpu.matmul %16, %17, %cst_15 {dimension_numbers = #tpu.dot_dimension_numbers<[1], [0], [0], [1], [0, 0, 1, 1], [], []>} : vector<16x16xf32>, vector<16x32xf32>, vector<16x32xf32> -> vector<16x32xf32>
    %19 = arith.addf %14, %18 : vector<16x32xf32>
    %20 = vector.extract_strided_slice %6 {offsets = [1, 0, 0], sizes = [1, 16, 16], strides = [1, 1, 1]} : vector<3x16x16xf32> to vector<1x16x16xf32>
    %21 = vector.shape_cast %20 : vector<1x16x16xf32> to vector<16x16xf32>
    %22 = vector.extract_strided_slice %9 {offsets = [0, 64], sizes = [16, 32], strides = [1, 1]} : vector<16x128xf32> to vector<16x32xf32>
    %cst_16 = arith.constant dense<0.000000e+00> : vector<16x32xf32>
    %23 = tpu.matmul %21, %22, %cst_16 {dimension_numbers = #tpu.dot_dimension_numbers<[1], [0], [0], [1], [0, 0, 1, 1], [], []>} : vector<16x16xf32>, vector<16x32xf32>, vector<16x32xf32> -> vector<16x32xf32>
    %24 = arith.addf %19, %23 : vector<16x32xf32>
    %25 = vector.extract_strided_slice %6 {offsets = [2, 0, 0], sizes = [1, 16, 16], strides = [1, 1, 1]} : vector<3x16x16xf32> to vector<1x16x16xf32>
    %26 = vector.shape_cast %25 : vector<1x16x16xf32> to vector<16x16xf32>
    %27 = vector.extract_strided_slice %9 {offsets = [0, 96], sizes = [16, 32], strides = [1, 1]} : vector<16x128xf32> to vector<16x32xf32>
    %cst_17 = arith.constant dense<0.000000e+00> : vector<16x32xf32>
    %28 = tpu.matmul %26, %27, %cst_17 {dimension_numbers = #tpu.dot_dimension_numbers<[1], [0], [0], [1], [0, 0, 1, 1], [], []>} : vector<16x16xf32>, vector<16x32xf32>, vector<16x32xf32> -> vector<16x32xf32>
    %29 = arith.addf %24, %28 : vector<16x32xf32>
    %cst_18 = arith.constant 0.000000e+00 : f32
    %30 = vector.broadcast %cst_18 : f32 to vector<16x32xf32>
    %31 = arith.maximumf %29, %30 : vector<16x32xf32>
    %c1 = arith.constant 1 : index
    %c0_19 = arith.constant 0 : index
    %c0_20 = arith.constant 0 : index
    %32 = vector.load %arg5[%c1, %c0_19, %c0_20] : memref<2x32x128xf32, #tpu.memory_space<vmem>>, vector<1x32x128xf32>
    %33 = vector.shape_cast %32 : vector<1x32x128xf32> to vector<32x128xf32>
    %cst_21 = arith.constant dense<0.000000e+00> : vector<16x128xf32>
    %34 = tpu.matmul %31, %33, %cst_21 {dimension_numbers = #tpu.dot_dimension_numbers<[1], [0], [0], [1], [0, 0, 1, 1], [], []>} : vector<16x32xf32>, vector<32x128xf32>, vector<16x128xf32> -> vector<16x128xf32>
    %35 = vector.extract_strided_slice %34 {offsets = [0, 0], sizes = [16, 32], strides = [1, 1]} : vector<16x128xf32> to vector<16x32xf32>
    %c1_22 = arith.constant 1 : index
    %c0_23 = arith.constant 0 : index
    %c0_24 = arith.constant 0 : index
    %36 = vector.load %arg6[%c1_22, %c0_23, %c0_24] : memref<2x1x32xf32, #tpu.memory_space<vmem>>, vector<1x1x32xf32>
    %37 = vector.shape_cast %36 : vector<1x1x32xf32> to vector<1x32xf32>
    %38 = vector.broadcast %37 : vector<1x32xf32> to vector<16x32xf32>
    %39 = arith.addf %35, %38 : vector<16x32xf32>
    %40 = vector.extract_strided_slice %6 {offsets = [0, 0, 0], sizes = [1, 16, 16], strides = [1, 1, 1]} : vector<3x16x16xf32> to vector<1x16x16xf32>
    %41 = vector.shape_cast %40 : vector<1x16x16xf32> to vector<16x16xf32>
    %42 = vector.extract_strided_slice %34 {offsets = [0, 32], sizes = [16, 32], strides = [1, 1]} : vector<16x128xf32> to vector<16x32xf32>
    %cst_25 = arith.constant dense<0.000000e+00> : vector<16x32xf32>
    %43 = tpu.matmul %41, %42, %cst_25 {dimension_numbers = #tpu.dot_dimension_numbers<[1], [0], [0], [1], [0, 0, 1, 1], [], []>} : vector<16x16xf32>, vector<16x32xf32>, vector<16x32xf32> -> vector<16x32xf32>
    %44 = arith.addf %39, %43 : vector<16x32xf32>
    %45 = vector.extract_strided_slice %6 {offsets = [1, 0, 0], sizes = [1, 16, 16], strides = [1, 1, 1]} : vector<3x16x16xf32> to vector<1x16x16xf32>
    %46 = vector.shape_cast %45 : vector<1x16x16xf32> to vector<16x16xf32>
    %47 = vector.extract_strided_slice %34 {offsets = [0, 64], sizes = [16, 32], strides = [1, 1]} : vector<16x128xf32> to vector<16x32xf32>
    %cst_26 = arith.constant dense<0.000000e+00> : vector<16x32xf32>
    %48 = tpu.matmul %46, %47, %cst_26 {dimension_numbers = #tpu.dot_dimension_numbers<[1], [0], [0], [1], [0, 0, 1, 1], [], []>} : vector<16x16xf32>, vector<16x32xf32>, vector<16x32xf32> -> vector<16x32xf32>
    %49 = arith.addf %44, %48 : vector<16x32xf32>
    %50 = vector.extract_strided_slice %6 {offsets = [2, 0, 0], sizes = [1, 16, 16], strides = [1, 1, 1]} : vector<3x16x16xf32> to vector<1x16x16xf32>
    %51 = vector.shape_cast %50 : vector<1x16x16xf32> to vector<16x16xf32>
    %52 = vector.extract_strided_slice %34 {offsets = [0, 96], sizes = [16, 32], strides = [1, 1]} : vector<16x128xf32> to vector<16x32xf32>
    %cst_27 = arith.constant dense<0.000000e+00> : vector<16x32xf32>
    %53 = tpu.matmul %51, %52, %cst_27 {dimension_numbers = #tpu.dot_dimension_numbers<[1], [0], [0], [1], [0, 0, 1, 1], [], []>} : vector<16x16xf32>, vector<16x32xf32>, vector<16x32xf32> -> vector<16x32xf32>
    %54 = arith.addf %49, %53 : vector<16x32xf32>
    %cst_28 = arith.constant 0.000000e+00 : f32
    %55 = vector.broadcast %cst_28 : f32 to vector<16x32xf32>
    %56 = arith.maximumf %54, %55 : vector<16x32xf32>
    %c0_29 = arith.constant 0 : index
    %c0_30 = arith.constant 0 : index
    %57 = vector.load %arg2[%c0_29, %c0_30] : memref<2x16xf32, #tpu.memory_space<vmem>>, vector<2x16xf32>
    %cst_31 = arith.constant dense<0.000000e+00> : vector<2x32xf32>
    %58 = tpu.matmul %57, %56, %cst_31 {dimension_numbers = #tpu.dot_dimension_numbers<[1], [0], [0], [1], [0, 0, 1, 1], [], []>} : vector<2x16xf32>, vector<16x32xf32>, vector<2x32xf32> -> vector<2x32xf32>
    %c0_32 = arith.constant 0 : index
    %c0_33 = arith.constant 0 : index
    %59 = vector.load %arg7[%c0_32, %c0_33] : memref<32x3xf32, #tpu.memory_space<vmem>>, vector<32x3xf32>
    %cst_34 = arith.constant dense<0.000000e+00> : vector<2x3xf32>
    %60 = tpu.matmul %58, %59, %cst_34 {dimension_numbers = #tpu.dot_dimension_numbers<[1], [0], [0], [1], [0, 0, 1, 1], [], []>} : vector<2x32xf32>, vector<32x3xf32>, vector<2x3xf32> -> vector<2x3xf32>
    %c0_35 = arith.constant 0 : index
    %c0_36 = arith.constant 0 : index
    %61 = vector.load %arg8[%c0_35, %c0_36] : memref<1x3xf32, #tpu.memory_space<vmem>>, vector<1x3xf32>
    %62 = vector.broadcast %61 : vector<1x3xf32> to vector<2x3xf32>
    %63 = arith.addf %60, %62 : vector<2x3xf32>
    %c0_37 = arith.constant 0 : index
    %c0_38 = arith.constant 0 : index
    %64 = vector.load %arg9[%c0_37, %c0_38] : memref<2x3xf32, #tpu.memory_space<vmem>>, vector<2x3xf32>
    tpu.vector_store %arg9[%c0_37, %c0_38], %63 {strides = array<i32>} : memref<2x3xf32, #tpu.memory_space<vmem>>, vector<2x3xf32>,
    return
  }
}

</mosaic_0001>

<llo_original>
// kernel: rgcn_forward.1
$region0: #{rgcn_forward.1}
  #allocation0 [shape = 'u32[]', space=smem, size = 0x4, offset = 0x4, fixed_abs, tag = 'smem constant byte address 0x4 - core index']
  #allocation1 [shape = 'u32[144,128]{1,0:T(1,128)}', space=vmem, size = 0x12000, scoped, tag = 'internal scratch']
  %s0 = inlined_call_operand.vmem [shape: f32[16,7], index: 0, kind: input, shape index: {}]
  %s1 = inlined_call_operand.vmem [shape: f32[3,16,16], index: 1, kind: input, shape index: {}]
  %s2 = inlined_call_operand.vmem [shape: f32[2,16], index: 2, kind: input, shape index: {}]
  %s3 = inlined_call_operand.vmem [shape: f32[7,32], index: 3, kind: input, shape index: {}]
  %s4 = inlined_call_operand.vmem [shape: f32[1,32], index: 4, kind: input, shape index: {}]
  %s5 = inlined_call_operand.vmem [shape: f32[2,32,128], index: 5, kind: input, shape index: {}]
  %s6 = inlined_call_operand.vmem [shape: f32[2,1,32], index: 6, kind: input, shape index: {}]
  %s7 = inlined_call_operand.vmem [shape: f32[32,3], index: 7, kind: input, shape index: {}]
  %s8 = inlined_call_operand.vmem [shape: f32[1,3], index: 8, kind: input, shape index: {}]
  %s9 = inlined_call_operand.hbm [shape: f32[2,3], index: 9, kind: output, shape index: {}]
  %s10 = sld [smem:[#allocation0]]
  $region46: #{rgcn_forward.1} parent=0
    _
  %s12 = ssub.s32 1, %s10
  %s13 = scalar_select 0, %s12, %s10
  $region1: #{rgcn_forward.1} parent=0
    #allocation2 [shape = 'u8[1024]{0}', space=vmem, size = 0x400, scoped, tag = 'output window, operand 0, single buffered']
    #allocation3 [shape = 's32[1]{0}', space=sflag, size = 0x4, scoped, tag = 'scoped memory for rgcn_forward.1']
    %14 = vsyncpa [#allocation3], 0
    // Predicated region
    $region2: #{rgcn_forward.1} parent=1 // pred_check
      _
    $region3: #{rgcn_forward.1} parent=1 // pred_check_branch
      %16 = sbr.rel (0) target = $region5
    $region4: #{rgcn_forward.1} parent=1 // pred_region
      _
    $region5: #{rgcn_forward.1} parent=1 // pred_fallthru
      _
    // Predicated region
    $region6: #{rgcn_forward.1} parent=1 // pred_check
      _
    $region7: #{rgcn_forward.1} parent=1 // pred_check_branch
      %18 = sbr.rel (0) target = $region9
    $region8: #{rgcn_forward.1} parent=1 // pred_region
      _
    $region9: #{rgcn_forward.1} parent=1 // pred_fallthru
      _
    // Predicated region
    $region10: #{rgcn_forward.1} parent=1 // pred_check
      _
    $region11: #{rgcn_forward.1} parent=1 // pred_check_branch
      %20 = sbr.rel (0) target = $region13
    $region12: #{rgcn_forward.1} parent=1 // pred_region
      _
    $region13: #{rgcn_forward.1} parent=1 // pred_fallthru
      _
    // Predicated region
    $region14: #{rgcn_forward.1} parent=1 // pred_check
      _
    $region15: #{rgcn_forward.1} parent=1 // pred_check_branch
      %22 = sbr.rel (0) target = $region17
    $region16: #{rgcn_forward.1} parent=1 // pred_region
      _
    $region17: #{rgcn_forward.1} parent=1 // pred_fallthru
      _
    // Predicated region
    $region18: #{rgcn_forward.1} parent=1 // pred_check
      _
    $region19: #{rgcn_forward.1} parent=1 // pred_check_branch
      %24 = sbr.rel (0) target = $region21
    $region20: #{rgcn_forward.1} parent=1 // pred_region
      _
    $region21: #{rgcn_forward.1} parent=1 // pred_fallthru
      _
    // Predicated region
    $region22: #{rgcn_forward.1} parent=1 // pred_check
      _
    $region23: #{rgcn_forward.1} parent=1 // pred_check_branch
      %26 = sbr.rel (0) target = $region25
    $region24: #{rgcn_forward.1} parent=1 // pred_region
      _
    $region25: #{rgcn_forward.1} parent=1 // pred_fallthru
      _
    // Predicated region
    $region26: #{rgcn_forward.1} parent=1 // pred_check
      _
    $region27: #{rgcn_forward.1} parent=1 // pred_check_branch
      %28 = sbr.rel (0) target = $region29
    $region28: #{rgcn_forward.1} parent=1 // pred_region
      _
    $region29: #{rgcn_forward.1} parent=1 // pred_fallthru
      _
    // Predicated region
    $region30: #{rgcn_forward.1} parent=1 // pred_check
      _
    $region31: #{rgcn_forward.1} parent=1 // pred_check_branch
      %30 = sbr.rel (0) target = $region33
    $region32: #{rgcn_forward.1} parent=1 // pred_region
      _
    $region33: #{rgcn_forward.1} parent=1 // pred_fallthru
      _
    // Predicated region
    $region34: #{rgcn_forward.1} parent=1 // pred_check
      _
    $region35: #{rgcn_forward.1} parent=1 // pred_check_branch
      %32 = sbr.rel (0) target = $region37
    $region36: #{rgcn_forward.1} parent=1 // pred_region
      _
    $region37: #{rgcn_forward.1} parent=1 // pred_fallthru
      _
    %v33 = vld [vmem:[%s0] sm:$0xff]
    %v34 = vld [vmem:[%s0 + $0x8] sm:$0xff]
    %v35 = vld [vmem:[%s3] sm:$0x7f]
    %v36 = vld [vmem:[%s4] sm:$0x1]
    %v38 = vlaneseq
    %v39 = vshrl.u32 %v38, 7
    %v40 = vsub.s32 0, %v39
    %v41 = vrot.slane %v36, %v40
    %vm43 = vcmask 56320
    %v45 = vsel %vm43, %v33, 0
    %v48 = vsel %vm43, %v34, 0
    %vm50 = vcmask 1046528
    %v52 = vsel %vm50, %v35, 0
    %54 = vmatprep.subr.mxu0 0.0
    %55 = vmatpush1.msra.mxu0 %v52
    %56 = vmatprep.subr.mxu0 0.0
    %57 = vmatpush1.msra.mxu0 0.0
    %58 = vmatprep.subr.mxu0 0.0
    %59 = vmatpush1.msra.mxu0 0.0
    %60 = vmatprep.subr.mxu0 0.0
    %61 = vmatpush1.msra.mxu0 0.0
    %62 = vmatprep.subr.mxu0 0.0
    %63 = vmatpush1.msra.mxu0 0.0
    %64 = vmatprep.subr.mxu0 0.0
    %65 = vmatpush1.msra.mxu0 0.0
    %66 = vmatprep.subr.mxu0 0.0
    %67 = vmatpush1.msra.mxu0 0.0
    %68 = vmatprep.subr.mxu0 0.0
    %69 = vmatpush1.msra.mxu0 0.0
    %70 = vmatprep.subr.mxu0 0.0
    %71 = vmatpush1.msra.mxu0 0.0
    %72 = vmatprep.subr.mxu0 0.0
    %73 = vmatpush1.msra.mxu0 0.0
    %74 = vmatprep.subr.mxu0 0.0
    %75 = vmatpush1.msra.mxu0 0.0
    %76 = vmatprep.subr.mxu0 0.0
    %77 = vmatpush1.msra.mxu0 0.0
    %78 = vmatprep.subr.mxu0 0.0
    %79 = vmatpush1.msra.mxu0 0.0
    %80 = vmatprep.subr.mxu0 0.0
    %81 = vmatpush1.msra.mxu0 0.0
    %82 = vmatprep.subr.mxu0 0.0
    %83 = vmatpush1.msra.mxu0 0.0
    %84 = vmatprep.subr.mxu0 0.0
    %85 = vmatpush1.msra.mxu0 0.0
    %86 = vmatprep.subr.mxu0 0.0
    %87 = vmatpush1.msra.mxu0 0.0
    %88 = vmatprep.subr.mxu0 0.0
    %89 = vmatpush1.msra.mxu0 0.0
    %90 = vmatprep.subr.mxu0 0.0
    %91 = vmatpush1.msra.mxu0 0.0
    %92 = vmatprep.subr.mxu0 0.0
    %93 = vmatpush1.msra.mxu0 0.0
    %94 = vmatprep.subr.mxu0 0.0
    %95 = vmatpush1.msra.mxu0 0.0
    %96 = vmatprep.subr.mxu0 0.0
    %97 = vmatpush1.msra.mxu0 0.0
    %98 = vmatprep.subr.mxu0 0.0
    %99 = vmatpush1.msra.mxu0 0.0
    %100 = vmatprep.subr.mxu0 0.0
    %101 = vmatpush1.msra.mxu0 0.0
    %102 = vmatprep.subr.mxu0 0.0
    %103 = vmatpush1.msra.mxu0 0.0
    %104 = vmatprep.subr.mxu0 0.0
    %105 = vmatpush1.msra.mxu0 0.0
    %106 = vmatprep.subr.mxu0 0.0
    %107 = vmatpush1.msra.mxu0 0.0
    %108 = vmatprep.subr.mxu0 0.0
    %109 = vmatpush1.msra.mxu0 0.0
    %110 = vmatprep.subr.mxu0 0.0
    %111 = vmatpush1.msra.mxu0 0.0
    %112 = vmatprep.subr.mxu0 0.0
    %113 = vmatpush1.msra.mxu0 0.0
    %114 = vmatprep.subr.mxu0 0.0
    %115 = vmatpush1.msra.mxu0 0.0
    %116 = vmatprep.subr.mxu0 0.0
    %117 = vmatpush1.msra.mxu0 0.0
    %118 = vmatprep.mubr.f32.mxu0 0.0
    %119 = vmatmul.mubr.f32.gmra.mrb[0].mxu0 %v45
    %v120 = vpop.f32.mrb[0].mxu0
    %v121 = vadd.f32 %v41, %v120
    %v122 = vpop.f32.mrb[0].mxu0
    %123 = vmatprep.mubr.f32.mxu0 0.0
    %124 = vmatmul.mubr.f32.gmra.mrb[0].mxu0 %v48
    %v125 = vpop.f32.mrb[0].mxu0
    %v126 = vadd.f32 %v41, %v125
    %v127 = vpop.f32.mrb[0].mxu0
    %128 = vdwg.mxu0
    %v129 = vld [vmem:[%s1] sm:$0xff]
    %v130 = vld [vmem:[%s1 + $0x8] sm:$0xff]
    %v131 = vld [vmem:[%s1 + $0x10] sm:$0xff]
    %v132 = vld [vmem:[%s1 + $0x18] sm:$0xff]
    %v133 = vld [vmem:[%s1 + $0x20] sm:$0xff]
    %v134 = vld [vmem:[%s1 + $0x28] sm:$0xff]
    %v135 = vld [vmem:[%s5] sm:$0xff]
    %v136 = vld [vmem:[%s5 + $0x8] sm:$0xff]
    %v137 = vld [vmem:[%s5 + $0x10] sm:$0xff]
    %v138 = vld [vmem:[%s5 + $0x18] sm:$0xff]
    %vm139 = vcmask 261120
    %v141 = vsel %vm139, %v121, 0
    %v144 = vsel %vm139, %v126, 0
    %146 = vmatprep.subr.mxu0 0.0
    %147 = vmatpush1.msra.mxu0 %v135
    %148 = vmatprep.subr.mxu0 0.0
    %149 = vmatpush1.msra.mxu0 %v136
    %150 = vmatprep.subr.mxu0 0.0
    %151 = vmatpush1.msra.mxu0 %v137
    %152 = vmatprep.subr.mxu0 0.0
    %153 = vmatpush1.msra.mxu0 %v138
    %154 = vmatprep.subr.mxu0 0.0
    %155 = vmatpush1.msra.mxu0 0.0
    %156 = vmatprep.subr.mxu0 0.0
    %157 = vmatpush1.msra.mxu0 0.0
    %158 = vmatprep.subr.mxu0 0.0
    %159 = vmatpush1.msra.mxu0 0.0
    %160 = vmatprep.subr.mxu0 0.0
    %161 = vmatpush1.msra.mxu0 0.0
    %162 = vmatprep.subr.mxu0 0.0
    %163 = vmatpush1.msra.mxu0 0.0
    %164 = vmatprep.subr.mxu0 0.0
    %165 = vmatpush1.msra.mxu0 0.0
    %166 = vmatprep.subr.mxu0 0.0
    %167 = vmatpush1.msra.mxu0 0.0
    %168 = vmatprep.subr.mxu0 0.0
    %169 = vmatpush1.msra.mxu0 0.0
    %170 = vmatprep.subr.mxu0 0.0
    %171 = vmatpush1.msra.mxu0 0.0
    %172 = vmatprep.subr.mxu0 0.0
    %173 = vmatpush1.msra.mxu0 0.0
    %174 = vmatprep.subr.mxu0 0.0
    %175 = vmatpush1.msra.mxu0 0.0
    %176 = vmatprep.subr.mxu0 0.0
    %177 = vmatpush1.msra.mxu0 0.0
    %178 = vmatprep.subr.mxu0 0.0
    %179 = vmatpush1.msra.mxu0 0.0
    %180 = vmatprep.subr.mxu0 0.0
    %181 = vmatpush1.msra.mxu0 0.0
    %182 = vmatprep.subr.mxu0 0.0
    %183 = vmatpush1.msra.mxu0 0.0
    %184 = vmatprep.subr.mxu0 0.0
    %185 = vmatpush1.msra.mxu0 0.0
    %186 = vmatprep.subr.mxu0 0.0
    %187 = vmatpush1.msra.mxu0 0.0
    %188 = vmatprep.subr.mxu0 0.0
    %189 = vmatpush1.msra.mxu0 0.0
    %190 = vmatprep.subr.mxu0 0.0
    %191 = vmatpush1.msra.mxu0 0.0
    %192 = vmatprep.subr.mxu0 0.0
    %193 = vmatpush1.msra.mxu0 0.0
    %194 = vmatprep.subr.mxu0 0.0
    %195 = vmatpush1.msra.mxu0 0.0
    %196 = vmatprep.subr.mxu0 0.0
    %197 = vmatpush1.msra.mxu0 0.0
    %198 = vmatprep.subr.mxu0 0.0
    %199 = vmatpush1.msra.mxu0 0.0
    %200 = vmatprep.subr.mxu0 0.0
    %201 = vmatpush1.msra.mxu0 0.0
    %202 = vmatprep.subr.mxu0 0.0
    %203 = vmatpush1.msra.mxu0 0.0
    %204 = vmatprep.subr.mxu0 0.0
    %205 = vmatpush1.msra.mxu0 0.0
    %206 = vmatprep.subr.mxu0 0.0
    %207 = vmatpush1.msra.mxu0 0.0
    %208 = vmatprep.subr.mxu0 0.0
    %209 = vmatpush1.msra.mxu0 0.0
    %210 = vmatprep.mubr.f32.mxu0 0.0
    %211 = vmatmul.mubr.f32.gmra.mrb[0].mxu0 %v141
    %v212 = vpop.f32.mrb[0].mxu0
    %v213 = vadd.f32 0.0, %v212
    %v214 = vpop.f32.mrb[0].mxu0
    %215 = vmatprep.mubr.f32.mxu0 0.0
    %216 = vmatmul.mubr.f32.gmra.mrb[0].mxu0 %v144
    %v217 = vpop.f32.mrb[0].mxu0
    %v218 = vadd.f32 0.0, %v217
    %v219 = vpop.f32.mrb[0].mxu0
    %220 = vdwg.mxu0
    %v221 = vld [vmem:[%s6] sm:$0x1]
    %v223 = vlaneseq
    %v224 = vshrl.u32 %v223, 7
    %v225 = vsub.s32 0, %v224
    %v226 = vrot.slane %v221, %v225
    %v228 = vadd.f32 %v213, %v226
    %v229 = vadd.f32 %v218, %v226
    %232 = vrot.lane.b32.xlu0 %v213, 96
    %v233 = vpop.permute.xlu0 %232
    %234 = vrot.lane.b32.xlu0 %v218, 96
    %v235 = vpop.permute.xlu0 %234
    %vm238 = vcmask 130048
    %v240 = vsel %vm238, %v129, 0
    %v243 = vsel %vm238, %v130, 0
    %245 = vmatprep.subr.mxu0 0.0
    %246 = vmatpush1.msra.mxu0 %v233
    %247 = vmatprep.subr.mxu0 0.0
    %248 = vmatpush1.msra.mxu0 %v235
    %249 = vmatprep.subr.mxu0 0.0
    %250 = vmatpush1.msra.mxu0 0.0
    %251 = vmatprep.subr.mxu0 0.0
    %252 = vmatpush1.msra.mxu0 0.0
    %253 = vmatprep.subr.mxu0 0.0
    %254 = vmatpush1.msra.mxu0 0.0
    %255 = vmatprep.subr.mxu0 0.0
    %256 = vmatpush1.msra.mxu0 0.0
    %257 = vmatprep.subr.mxu0 0.0
    %258 = vmatpush1.msra.mxu0 0.0
    %259 = vmatprep.subr.mxu0 0.0
    %260 = vmatpush1.msra.mxu0 0.0
    %261 = vmatprep.subr.mxu0 0.0
    %262 = vmatpush1.msra.mxu0 0.0
    %263 = vmatprep.subr.mxu0 0.0
    %264 = vmatpush1.msra.mxu0 0.0
    %265 = vmatprep.subr.mxu0 0.0
    %266 = vmatpush1.msra.mxu0 0.0
    %267 = vmatprep.subr.mxu0 0.0
    %268 = vmatpush1.msra.mxu0 0.0
    %269 = vmatprep.subr.mxu0 0.0
    %270 = vmatpush1.msra.mxu0 0.0
    %271 = vmatprep.subr.mxu0 0.0
    %272 = vmatpush1.msra.mxu0 0.0
    %273 = vmatprep.subr.mxu0 0.0
    %274 = vmatpush1.msra.mxu0 0.0
    %275 = vmatprep.subr.mxu0 0.0
    %276 = vmatpush1.msra.mxu0 0.0
    %277 = vmatprep.subr.mxu0 0.0
    %278 = vmatpush1.msra.mxu0 0.0
    %279 = vmatprep.subr.mxu0 0.0
    %280 = vmatpush1.msra.mxu0 0.0
    %281 = vmatprep.subr.mxu0 0.0
    %282 = vmatpush1.msra.mxu0 0.0
    %283 = vmatprep.subr.mxu0 0.0
    %284 = vmatpush1.msra.mxu0 0.0
    %285 = vmatprep.subr.mxu0 0.0
    %286 = vmatpush1.msra.mxu0 0.0
    %287 = vmatprep.subr.mxu0 0.0
    %288 = vmatpush1.msra.mxu0 0.0
    %289 = vmatprep.subr.mxu0 0.0
    %290 = vmatpush1.msra.mxu0 0.0
    %291 = vmatprep.subr.mxu0 0.0
    %292 = vmatpush1.msra.mxu0 0.0
    %293 = vmatprep.subr.mxu0 0.0
    %294 = vmatpush1.msra.mxu0 0.0
    %295 = vmatprep.subr.mxu0 0.0
    %296 = vmatpush1.msra.mxu0 0.0
    %297 = vmatprep.subr.mxu0 0.0
    %298 = vmatpush1.msra.mxu0 0.0
    %299 = vmatprep.subr.mxu0 0.0
    %300 = vmatpush1.msra.mxu0 0.0
    %301 = vmatprep.subr.mxu0 0.0
    %302 = vmatpush1.msra.mxu0 0.0
    %303 = vmatprep.subr.mxu0 0.0
    %304 = vmatpush1.msra.mxu0 0.0
    %305 = vmatprep.subr.mxu0 0.0
    %306 = vmatpush1.msra.mxu0 0.0
    %307 = vmatprep.subr.mxu0 0.0
    %308 = vmatpush1.msra.mxu0 0.0
    %309 = vmatprep.mubr.f32.mxu0 0.0
    %310 = vmatmul.mubr.f32.gmra.mrb[0].mxu0 %v240
    %v311 = vpop.f32.mrb[0].mxu0
    %v312 = vadd.f32 0.0, %v311
    %v313 = vpop.f32.mrb[0].mxu0
    %314 = vmatprep.mubr.f32.mxu0 0.0
    %315 = vmatmul.mubr.f32.gmra.mrb[0].mxu0 %v243
    %v316 = vpop.f32.mrb[0].mxu0
    %v317 = vadd.f32 0.0, %v316
    %v318 = vpop.f32.mrb[0].mxu0
    %319 = vdwg.mxu0
    %v320 = vadd.f32 %v228, %v312
    %v321 = vadd.f32 %v229, %v317
    %322 = vrot.lane.b32.xlu0 %v213, 64
    %v323 = vpop.permute.xlu0 %322
    %324 = vrot.lane.b32.xlu0 %v218, 64
    %v325 = vpop.permute.xlu0 %324
    %v329 = vsel %vm238, %v131, 0
    %v332 = vsel %vm238, %v132, 0
    %334 = vmatprep.subr.mxu0 0.0
    %335 = vmatpush1.msra.mxu0 %v323
    %336 = vmatprep.subr.mxu0 0.0
    %337 = vmatpush1.msra.mxu0 %v325
    %338 = vmatprep.subr.mxu0 0.0
    %339 = vmatpush1.msra.mxu0 0.0
    %340 = vmatprep.subr.mxu0 0.0
    %341 = vmatpush1.msra.mxu0 0.0
    %342 = vmatprep.subr.mxu0 0.0
    %343 = vmatpush1.msra.mxu0 0.0
    %344 = vmatprep.subr.mxu0 0.0
    %345 = vmatpush1.msra.mxu0 0.0
    %346 = vmatprep.subr.mxu0 0.0
    %347 = vmatpush1.msra.mxu0 0.0
    %348 = vmatprep.subr.mxu0 0.0
    %349 = vmatpush1.msra.mxu0 0.0
    %350 = vmatprep.subr.mxu0 0.0
    %351 = vmatpush1.msra.mxu0 0.0
    %352 = vmatprep.subr.mxu0 0.0
    %353 = vmatpush1.msra.mxu0 0.0
    %354 = vmatprep.subr.mxu0 0.0
    %355 = vmatpush1.msra.mxu0 0.0
    %356 = vmatprep.subr.mxu0 0.0
    %357 = vmatpush1.msra.mxu0 0.0
    %358 = vmatprep.subr.mxu0 0.0
    %359 = vmatpush1.msra.mxu0 0.0
    %360 = vmatprep.subr.mxu0 0.0
    %361 = vmatpush1.msra.mxu0 0.0
    %362 = vmatprep.subr.mxu0 0.0
    %363 = vmatpush1.msra.mxu0 0.0
    %364 = vmatprep.subr.mxu0 0.0
    %365 = vmatpush1.msra.mxu0 0.0
    %366 = vmatprep.subr.mxu0 0.0
    %367 = vmatpush1.msra.mxu0 0.0
    %368 = vmatprep.subr.mxu0 0.0
    %369 = vmatpush1.msra.mxu0 0.0
    %370 = vmatprep.subr.mxu0 0.0
    %371 = vmatpush1.msra.mxu0 0.0
    %372 = vmatprep.subr.mxu0 0.0
    %373 = vmatpush1.msra.mxu0 0.0
    %374 = vmatprep.subr.mxu0 0.0
    %375 = vmatpush1.msra.mxu0 0.0
    %376 = vmatprep.subr.mxu0 0.0
    %377 = vmatpush1.msra.mxu0 0.0
    %378 = vmatprep.subr.mxu0 0.0
    %379 = vmatpush1.msra.mxu0 0.0
    %380 = vmatprep.subr.mxu0 0.0
    %381 = vmatpush1.msra.mxu0 0.0
    %382 = vmatprep.subr.mxu0 0.0
    %383 = vmatpush1.msra.mxu0 0.0
    %384 = vmatprep.subr.mxu0 0.0
    %385 = vmatpush1.msra.mxu0 0.0
    %386 = vmatprep.subr.mxu0 0.0
    %387 = vmatpush1.msra.mxu0 0.0
    %388 = vmatprep.subr.mxu0 0.0
    %389 = vmatpush1.msra.mxu0 0.0
    %390 = vmatprep.subr.mxu0 0.0
    %391 = vmatpush1.msra.mxu0 0.0
    %392 = vmatprep.subr.mxu0 0.0
    %393 = vmatpush1.msra.mxu0 0.0
    %394 = vmatprep.subr.mxu0 0.0
    %395 = vmatpush1.msra.mxu0 0.0
    %396 = vmatprep.subr.mxu0 0.0
    %397 = vmatpush1.msra.mxu0 0.0
    %398 = vmatprep.mubr.f32.mxu0 0.0
    %399 = vmatmul.mubr.f32.gmra.mrb[0].mxu0 %v329
    %v400 = vpop.f32.mrb[0].mxu0
    %v401 = vadd.f32 0.0, %v400
    %v402 = vpop.f32.mrb[0].mxu0
    %403 = vmatprep.mubr.f32.mxu0 0.0
    %404 = vmatmul.mubr.f32.gmra.mrb[0].mxu0 %v332
    %v405 = vpop.f32.mrb[0].mxu0
    %v406 = vadd.f32 0.0, %v405
    %v407 = vpop.f32.mrb[0].mxu0
    %408 = vdwg.mxu0
    %v409 = vadd.f32 %v320, %v401
    %v410 = vadd.f32 %v321, %v406
    %411 = vrot.lane.b32.xlu0 %v213, 32
    %v412 = vpop.permute.xlu0 %411
    %413 = vrot.lane.b32.xlu0 %v218, 32
    %v414 = vpop.permute.xlu0 %413
    %v418 = vsel %vm238, %v133, 0
    %v421 = vsel %vm238, %v134, 0
    %423 = vmatprep.subr.mxu0 0.0
    %424 = vmatpush1.msra.mxu0 %v412
    %425 = vmatprep.subr.mxu0 0.0
    %426 = vmatpush1.msra.mxu0 %v414
    %427 = vmatprep.subr.mxu0 0.0
    %428 = vmatpush1.msra.mxu0 0.0
    %429 = vmatprep.subr.mxu0 0.0
    %430 = vmatpush1.msra.mxu0 0.0
    %431 = vmatprep.subr.mxu0 0.0
    %432 = vmatpush1.msra.mxu0 0.0
    %433 = vmatprep.subr.mxu0 0.0
    %434 = vmatpush1.msra.mxu0 0.0
    %435 = vmatprep.subr.mxu0 0.0
    %436 = vmatpush1.msra.mxu0 0.0
    %437 = vmatprep.subr.mxu0 0.0
    %438 = vmatpush1.msra.mxu0 0.0
    %439 = vmatprep.subr.mxu0 0.0
    %440 = vmatpush1.msra.mxu0 0.0
    %441 = vmatprep.subr.mxu0 0.0
    %442 = vmatpush1.msra.mxu0 0.0
    %443 = vmatprep.subr.mxu0 0.0
    %444 = vmatpush1.msra.mxu0 0.0
    %445 = vmatprep.subr.mxu0 0.0
    %446 = vmatpush1.msra.mxu0 0.0
    %447 = vmatprep.subr.mxu0 0.0
    %448 = vmatpush1.msra.mxu0 0.0
    %449 = vmatprep.subr.mxu0 0.0
    %450 = vmatpush1.msra.mxu0 0.0
    %451 = vmatprep.subr.mxu0 0.0
    %452 = vmatpush1.msra.mxu0 0.0
    %453 = vmatprep.subr.mxu0 0.0
    %454 = vmatpush1.msra.mxu0 0.0
    %455 = vmatprep.subr.mxu0 0.0
    %456 = vmatpush1.msra.mxu0 0.0
    %457 = vmatprep.subr.mxu0 0.0
    %458 = vmatpush1.msra.mxu0 0.0
    %459 = vmatprep.subr.mxu0 0.0
    %460 = vmatpush1.msra.mxu0 0.0
    %461 = vmatprep.subr.mxu0 0.0
    %462 = vmatpush1.msra.mxu0 0.0
    %463 = vmatprep.subr.mxu0 0.0
    %464 = vmatpush1.msra.mxu0 0.0
    %465 = vmatprep.subr.mxu0 0.0
    %466 = vmatpush1.msra.mxu0 0.0
    %467 = vmatprep.subr.mxu0 0.0
    %468 = vmatpush1.msra.mxu0 0.0
    %469 = vmatprep.subr.mxu0 0.0
    %470 = vmatpush1.msra.mxu0 0.0
    %471 = vmatprep.subr.mxu0 0.0
    %472 = vmatpush1.msra.mxu0 0.0
    %473 = vmatprep.subr.mxu0 0.0
    %474 = vmatpush1.msra.mxu0 0.0
    %475 = vmatprep.subr.mxu0 0.0
    %476 = vmatpush1.msra.mxu0 0.0
    %477 = vmatprep.subr.mxu0 0.0
    %478 = vmatpush1.msra.mxu0 0.0
    %479 = vmatprep.subr.mxu0 0.0
    %480 = vmatpush1.msra.mxu0 0.0
    %481 = vmatprep.subr.mxu0 0.0
    %482 = vmatpush1.msra.mxu0 0.0
    %483 = vmatprep.subr.mxu0 0.0
    %484 = vmatpush1.msra.mxu0 0.0
    %485 = vmatprep.subr.mxu0 0.0
    %486 = vmatpush1.msra.mxu0 0.0
    %487 = vmatprep.mubr.f32.mxu0 0.0
    %488 = vmatmul.mubr.f32.gmra.mrb[0].mxu0 %v418
    %v489 = vpop.f32.mrb[0].mxu0
    %v490 = vadd.f32 0.0, %v489
    %v491 = vpop.f32.mrb[0].mxu0
    %492 = vmatprep.mubr.f32.mxu0 0.0
    %493 = vmatmul.mubr.f32.gmra.mrb[0].mxu0 %v421
    %v494 = vpop.f32.mrb[0].mxu0
    %v495 = vadd.f32 0.0, %v494
    %v496 = vpop.f32.mrb[0].mxu0
    %497 = vdwg.mxu0
    %v498 = vadd.f32 %v409, %v490
    %v499 = vadd.f32 %v410, %v495
    %v500 = vmax.f32 %v498, 0.0
    %v501 = vmax.f32 %v499, 0.0
    %s502 = scalar_lea.vmem %s5, 32
    %v503 = vld [vmem:[%s502] sm:$0xff]
    %v504 = vld [vmem:[%s502 + $0x8] sm:$0xff]
    %v505 = vld [vmem:[%s502 + $0x10] sm:$0xff]
    %v506 = vld [vmem:[%s502 + $0x18] sm:$0xff]
    %v508 = vsel %vm139, %v500, 0
    %v511 = vsel %vm139, %v501, 0
    %513 = vmatprep.subr.mxu0 0.0
    %514 = vmatpush1.msra.mxu0 %v503
    %515 = vmatprep.subr.mxu0 0.0
    %516 = vmatpush1.msra.mxu0 %v504
    %517 = vmatprep.subr.mxu0 0.0
    %518 = vmatpush1.msra.mxu0 %v505
    %519 = vmatprep.subr.mxu0 0.0
    %520 = vmatpush1.msra.mxu0 %v506
    %521 = vmatprep.subr.mxu0 0.0
    %522 = vmatpush1.msra.mxu0 0.0
    %523 = vmatprep.subr.mxu0 0.0
    %524 = vmatpush1.msra.mxu0 0.0
    %525 = vmatprep.subr.mxu0 0.0
    %526 = vmatpush1.msra.mxu0 0.0
    %527 = vmatprep.subr.mxu0 0.0
    %528 = vmatpush1.msra.mxu0 0.0
    %529 = vmatprep.subr.mxu0 0.0
    %530 = vmatpush1.msra.mxu0 0.0
    %531 = vmatprep.subr.mxu0 0.0
    %532 = vmatpush1.msra.mxu0 0.0
    %533 = vmatprep.subr.mxu0 0.0
    %534 = vmatpush1.msra.mxu0 0.0
    %535 = vmatprep.subr.mxu0 0.0
    %536 = vmatpush1.msra.mxu0 0.0
    %537 = vmatprep.subr.mxu0 0.0
    %538 = vmatpush1.msra.mxu0 0.0
    %539 = vmatprep.subr.mxu0 0.0
    %540 = vmatpush1.msra.mxu0 0.0
    %541 = vmatprep.subr.mxu0 0.0
    %542 = vmatpush1.msra.mxu0 0.0
    %543 = vmatprep.subr.mxu0 0.0
    %544 = vmatpush1.msra.mxu0 0.0
    %545 = vmatprep.subr.mxu0 0.0
    %546 = vmatpush1.msra.mxu0 0.0
    %547 = vmatprep.subr.mxu0 0.0
    %548 = vmatpush1.msra.mxu0 0.0
    %549 = vmatprep.subr.mxu0 0.0
    %550 = vmatpush1.msra.mxu0 0.0
    %551 = vmatprep.subr.mxu0 0.0
    %552 = vmatpush1.msra.mxu0 0.0
    %553 = vmatprep.subr.mxu0 0.0
    %554 = vmatpush1.msra.mxu0 0.0
    %555 = vmatprep.subr.mxu0 0.0
    %556 = vmatpush1.msra.mxu0 0.0
    %557 = vmatprep.subr.mxu0 0.0
    %558 = vmatpush1.msra.mxu0 0.0
    %559 = vmatprep.subr.mxu0 0.0
    %560 = vmatpush1.msra.mxu0 0.0
    %561 = vmatprep.subr.mxu0 0.0
    %562 = vmatpush1.msra.mxu0 0.0
    %563 = vmatprep.subr.mxu0 0.0
    %564 = vmatpush1.msra.mxu0 0.0
    %565 = vmatprep.subr.mxu0 0.0
    %566 = vmatpush1.msra.mxu0 0.0
    %567 = vmatprep.subr.mxu0 0.0
    %568 = vmatpush1.msra.mxu0 0.0
    %569 = vmatprep.subr.mxu0 0.0
    %570 = vmatpush1.msra.mxu0 0.0
    %571 = vmatprep.subr.mxu0 0.0
    %572 = vmatpush1.msra.mxu0 0.0
    %573 = vmatprep.subr.mxu0 0.0
    %574 = vmatpush1.msra.mxu0 0.0
    %575 = vmatprep.subr.mxu0 0.0
    %576 = vmatpush1.msra.mxu0 0.0
    %577 = vmatprep.mubr.f32.mxu0 0.0
    %578 = vmatmul.mubr.f32.gmra.mrb[0].mxu0 %v508
    %v579 = vpop.f32.mrb[0].mxu0
    %v580 = vadd.f32 0.0, %v579
    %v581 = vpop.f32.mrb[0].mxu0
    %582 = vmatprep.mubr.f32.mxu0 0.0
    %583 = vmatmul.mubr.f32.gmra.mrb[0].mxu0 %v511
    %v584 = vpop.f32.mrb[0].mxu0
    %v585 = vadd.f32 0.0, %v584
    %v586 = vpop.f32.mrb[0].mxu0
    %587 = vdwg.mxu0
    %s588 = scalar_lea.vmem %s6, 1
    %v589 = vld [vmem:[%s588] sm:$0x1]
    %v591 = vlaneseq
    %v592 = vshrl.u32 %v591, 7
    %v593 = vsub.s32 0, %v592
    %v594 = vrot.slane %v589, %v593
    %v596 = vadd.f32 %v580, %v594
    %v597 = vadd.f32 %v585, %v594
    %600 = vrot.lane.b32.xlu0 %v580, 96
    %v601 = vpop.permute.xlu0 %600
    %602 = vrot.lane.b32.xlu0 %v585, 96
    %v603 = vpop.permute.xlu0 %602
    %606 = vmatprep.subr.mxu0 0.0
    %607 = vmatpush1.msra.mxu0 %v601
    %608 = vmatprep.subr.mxu0 0.0
    %609 = vmatpush1.msra.mxu0 %v603
    %610 = vmatprep.subr.mxu0 0.0
    %611 = vmatpush1.msra.mxu0 0.0
    %612 = vmatprep.subr.mxu0 0.0
    %613 = vmatpush1.msra.mxu0 0.0
    %614 = vmatprep.subr.mxu0 0.0
    %615 = vmatpush1.msra.mxu0 0.0
    %616 = vmatprep.subr.mxu0 0.0
    %617 = vmatpush1.msra.mxu0 0.0
    %618 = vmatprep.subr.mxu0 0.0
    %619 = vmatpush1.msra.mxu0 0.0
    %620 = vmatprep.subr.mxu0 0.0
    %621 = vmatpush1.msra.mxu0 0.0
    %622 = vmatprep.subr.mxu0 0.0
    %623 = vmatpush1.msra.mxu0 0.0
    %624 = vmatprep.subr.mxu0 0.0
    %625 = vmatpush1.msra.mxu0 0.0
    %626 = vmatprep.subr.mxu0 0.0
    %627 = vmatpush1.msra.mxu0 0.0
    %628 = vmatprep.subr.mxu0 0.0
    %629 = vmatpush1.msra.mxu0 0.0
    %630 = vmatprep.subr.mxu0 0.0
    %631 = vmatpush1.msra.mxu0 0.0
    %632 = vmatprep.subr.mxu0 0.0
    %633 = vmatpush1.msra.mxu0 0.0
    %634 = vmatprep.subr.mxu0 0.0
    %635 = vmatpush1.msra.mxu0 0.0
    %636 = vmatprep.subr.mxu0 0.0
    %637 = vmatpush1.msra.mxu0 0.0
    %638 = vmatprep.subr.mxu0 0.0
    %639 = vmatpush1.msra.mxu0 0.0
    %640 = vmatprep.subr.mxu0 0.0
    %641 = vmatpush1.msra.mxu0 0.0
    %642 = vmatprep.subr.mxu0 0.0
    %643 = vmatpush1.msra.mxu0 0.0
    %644 = vmatprep.subr.mxu0 0.0
    %645 = vmatpush1.msra.mxu0 0.0
    %646 = vmatprep.subr.mxu0 0.0
    %647 = vmatpush1.msra.mxu0 0.0
    %648 = vmatprep.subr.mxu0 0.0
    %649 = vmatpush1.msra.mxu0 0.0
    %650 = vmatprep.subr.mxu0 0.0
    %651 = vmatpush1.msra.mxu0 0.0
    %652 = vmatprep.subr.mxu0 0.0
    %653 = vmatpush1.msra.mxu0 0.0
    %654 = vmatprep.subr.mxu0 0.0
    %655 = vmatpush1.msra.mxu0 0.0
    %656 = vmatprep.subr.mxu0 0.0
    %657 = vmatpush1.msra.mxu0 0.0
    %658 = vmatprep.subr.mxu0 0.0
    %659 = vmatpush1.msra.mxu0 0.0
    %660 = vmatprep.subr.mxu0 0.0
    %661 = vmatpush1.msra.mxu0 0.0
    %662 = vmatprep.subr.mxu0 0.0
    %663 = vmatpush1.msra.mxu0 0.0
    %664 = vmatprep.subr.mxu0 0.0
    %665 = vmatpush1.msra.mxu0 0.0
    %666 = vmatprep.subr.mxu0 0.0
    %667 = vmatpush1.msra.mxu0 0.0
    %668 = vmatprep.subr.mxu0 0.0
    %669 = vmatpush1.msra.mxu0 0.0
    %670 = vmatprep.mubr.f32.mxu0 0.0
    %671 = vmatmul.mubr.f32.gmra.mrb[0].mxu0 %v240
    %v672 = vpop.f32.mrb[0].mxu0
    %v673 = vadd.f32 0.0, %v672
    %v674 = vpop.f32.mrb[0].mxu0
    %675 = vmatprep.mubr.f32.mxu0 0.0
    %676 = vmatmul.mubr.f32.gmra.mrb[0].mxu0 %v243
    %v677 = vpop.f32.mrb[0].mxu0
    %v678 = vadd.f32 0.0, %v677
    %v679 = vpop.f32.mrb[0].mxu0
    %680 = vdwg.mxu0
    %v681 = vadd.f32 %v596, %v673
    %v682 = vadd.f32 %v597, %v678
    %683 = vrot.lane.b32.xlu0 %v580, 64
    %v684 = vpop.permute.xlu0 %683
    %685 = vrot.lane.b32.xlu0 %v585, 64
    %v686 = vpop.permute.xlu0 %685
    %689 = vmatprep.subr.mxu0 0.0
    %690 = vmatpush1.msra.mxu0 %v684
    %691 = vmatprep.subr.mxu0 0.0
    %692 = vmatpush1.msra.mxu0 %v686
    %693 = vmatprep.subr.mxu0 0.0
    %694 = vmatpush1.msra.mxu0 0.0
    %695 = vmatprep.subr.mxu0 0.0
    %696 = vmatpush1.msra.mxu0 0.0
    %697 = vmatprep.subr.mxu0 0.0
    %698 = vmatpush1.msra.mxu0 0.0
    %699 = vmatprep.subr.mxu0 0.0
    %700 = vmatpush1.msra.mxu0 0.0
    %701 = vmatprep.subr.mxu0 0.0
    %702 = vmatpush1.msra.mxu0 0.0
    %703 = vmatprep.subr.mxu0 0.0
    %704 = vmatpush1.msra.mxu0 0.0
    %705 = vmatprep.subr.mxu0 0.0
    %706 = vmatpush1.msra.mxu0 0.0
    %707 = vmatprep.subr.mxu0 0.0
    %708 = vmatpush1.msra.mxu0 0.0
    %709 = vmatprep.subr.mxu0 0.0
    %710 = vmatpush1.msra.mxu0 0.0
    %711 = vmatprep.subr.mxu0 0.0
    %712 = vmatpush1.msra.mxu0 0.0
    %713 = vmatprep.subr.mxu0 0.0
    %714 = vmatpush1.msra.mxu0 0.0
    %715 = vmatprep.subr.mxu0 0.0
    %716 = vmatpush1.msra.mxu0 0.0
    %717 = vmatprep.subr.mxu0 0.0
    %718 = vmatpush1.msra.mxu0 0.0
    %719 = vmatprep.subr.mxu0 0.0
    %720 = vmatpush1.msra.mxu0 0.0
    %721 = vmatprep.subr.mxu0 0.0
    %722 = vmatpush1.msra.mxu0 0.0
    %723 = vmatprep.subr.mxu0 0.0
    %724 = vmatpush1.msra.mxu0 0.0
    %725 = vmatprep.subr.mxu0 0.0
    %726 = vmatpush1.msra.mxu0 0.0
    %727 = vmatprep.subr.mxu0 0.0
    %728 = vmatpush1.msra.mxu0 0.0
    %729 = vmatprep.subr.mxu0 0.0
    %730 = vmatpush1.msra.mxu0 0.0
    %731 = vmatprep.subr.mxu0 0.0
    %732 = vmatpush1.msra.mxu0 0.0
    %733 = vmatprep.subr.mxu0 0.0
    %734 = vmatpush1.msra.mxu0 0.0
    %735 = vmatprep.subr.mxu0 0.0
    %736 = vmatpush1.msra.mxu0 0.0
    %737 = vmatprep.subr.mxu0 0.0
    %738 = vmatpush1.msra.mxu0 0.0
    %739 = vmatprep.subr.mxu0 0.0
    %740 = vmatpush1.msra.mxu0 0.0
    %741 = vmatprep.subr.mxu0 0.0
    %742 = vmatpush1.msra.mxu0 0.0
    %743 = vmatprep.subr.mxu0 0.0
    %744 = vmatpush1.msra.mxu0 0.0
    %745 = vmatprep.subr.mxu0 0.0
    %746 = vmatpush1.msra.mxu0 0.0
    %747 = vmatprep.subr.mxu0 0.0
    %748 = vmatpush1.msra.mxu0 0.0
    %749 = vmatprep.subr.mxu0 0.0
    %750 = vmatpush1.msra.mxu0 0.0
    %751 = vmatprep.subr.mxu0 0.0
    %752 = vmatpush1.msra.mxu0 0.0
    %753 = vmatprep.mubr.f32.mxu0 0.0
    %754 = vmatmul.mubr.f32.gmra.mrb[0].mxu0 %v329
    %v755 = vpop.f32.mrb[0].mxu0
    %v756 = vadd.f32 0.0, %v755
    %v757 = vpop.f32.mrb[0].mxu0
    %758 = vmatprep.mubr.f32.mxu0 0.0
    %759 = vmatmul.mubr.f32.gmra.mrb[0].mxu0 %v332
    %v760 = vpop.f32.mrb[0].mxu0
    %v761 = vadd.f32 0.0, %v760
    %v762 = vpop.f32.mrb[0].mxu0
    %763 = vdwg.mxu0
    %v764 = vadd.f32 %v681, %v756
    %v765 = vadd.f32 %v682, %v761
    %766 = vrot.lane.b32.xlu0 %v580, 32
    %v767 = vpop.permute.xlu0 %766
    %768 = vrot.lane.b32.xlu0 %v585, 32
    %v769 = vpop.permute.xlu0 %768
    %772 = vmatprep.subr.mxu0 0.0
    %773 = vmatpush1.msra.mxu0 %v767
    %774 = vmatprep.subr.mxu0 0.0
    %775 = vmatpush1.msra.mxu0 %v769
    %776 = vmatprep.subr.mxu0 0.0
    %777 = vmatpush1.msra.mxu0 0.0
    %778 = vmatprep.subr.mxu0 0.0
    %779 = vmatpush1.msra.mxu0 0.0
    %780 = vmatprep.subr.mxu0 0.0
    %781 = vmatpush1.msra.mxu0 0.0
    %782 = vmatprep.subr.mxu0 0.0
    %783 = vmatpush1.msra.mxu0 0.0
    %784 = vmatprep.subr.mxu0 0.0
    %785 = vmatpush1.msra.mxu0 0.0
    %786 = vmatprep.subr.mxu0 0.0
    %787 = vmatpush1.msra.mxu0 0.0
    %788 = vmatprep.subr.mxu0 0.0
    %789 = vmatpush1.msra.mxu0 0.0
    %790 = vmatprep.subr.mxu0 0.0
    %791 = vmatpush1.msra.mxu0 0.0
    %792 = vmatprep.subr.mxu0 0.0
    %793 = vmatpush1.msra.mxu0 0.0
    %794 = vmatprep.subr.mxu0 0.0
    %795 = vmatpush1.msra.mxu0 0.0
    %796 = vmatprep.subr.mxu0 0.0
    %797 = vmatpush1.msra.mxu0 0.0
    %798 = vmatprep.subr.mxu0 0.0
    %799 = vmatpush1.msra.mxu0 0.0
    %800 = vmatprep.subr.mxu0 0.0
    %801 = vmatpush1.msra.mxu0 0.0
    %802 = vmatprep.subr.mxu0 0.0
    %803 = vmatpush1.msra.mxu0 0.0
    %804 = vmatprep.subr.mxu0 0.0
    %805 = vmatpush1.msra.mxu0 0.0
    %806 = vmatprep.subr.mxu0 0.0
    %807 = vmatpush1.msra.mxu0 0.0
    %808 = vmatprep.subr.mxu0 0.0
    %809 = vmatpush1.msra.mxu0 0.0
    %810 = vmatprep.subr.mxu0 0.0
    %811 = vmatpush1.msra.mxu0 0.0
    %812 = vmatprep.subr.mxu0 0.0
    %813 = vmatpush1.msra.mxu0 0.0
    %814 = vmatprep.subr.mxu0 0.0
    %815 = vmatpush1.msra.mxu0 0.0
    %816 = vmatprep.subr.mxu0 0.0
    %817 = vmatpush1.msra.mxu0 0.0
    %818 = vmatprep.subr.mxu0 0.0
    %819 = vmatpush1.msra.mxu0 0.0
    %820 = vmatprep.subr.mxu0 0.0
    %821 = vmatpush1.msra.mxu0 0.0
    %822 = vmatprep.subr.mxu0 0.0
    %823 = vmatpush1.msra.mxu0 0.0
    %824 = vmatprep.subr.mxu0 0.0
    %825 = vmatpush1.msra.mxu0 0.0
    %826 = vmatprep.subr.mxu0 0.0
    %827 = vmatpush1.msra.mxu0 0.0
    %828 = vmatprep.subr.mxu0 0.0
    %829 = vmatpush1.msra.mxu0 0.0
    %830 = vmatprep.subr.mxu0 0.0
    %831 = vmatpush1.msra.mxu0 0.0
    %832 = vmatprep.subr.mxu0 0.0
    %833 = vmatpush1.msra.mxu0 0.0
    %834 = vmatprep.subr.mxu0 0.0
    %835 = vmatpush1.msra.mxu0 0.0
    %836 = vmatprep.mubr.f32.mxu0 0.0
    %837 = vmatmul.mubr.f32.gmra.mrb[0].mxu0 %v418
    %v838 = vpop.f32.mrb[0].mxu0
    %v839 = vadd.f32 0.0, %v838
    %v840 = vpop.f32.mrb[0].mxu0
    %841 = vmatprep.mubr.f32.mxu0 0.0
    %842 = vmatmul.mubr.f32.gmra.mrb[0].mxu0 %v421
    %v843 = vpop.f32.mrb[0].mxu0
    %v844 = vadd.f32 0.0, %v843
    %v845 = vpop.f32.mrb[0].mxu0
    %846 = vdwg.mxu0
    %v847 = vadd.f32 %v764, %v839
    %v848 = vadd.f32 %v765, %v844
    %v849 = vmax.f32 %v847, 0.0
    %v850 = vmax.f32 %v848, 0.0
    %v851 = vld [vmem:[%s2] sm:$0x3]
    %v853 = vsel %vm238, %v851, 0
    %855 = vmatprep.subr.mxu0 0.0
    %856 = vmatpush1.msra.mxu0 %v849
    %857 = vmatprep.subr.mxu0 0.0
    %858 = vmatpush1.msra.mxu0 %v850
    %859 = vmatprep.subr.mxu0 0.0
    %860 = vmatpush1.msra.mxu0 0.0
    %861 = vmatprep.subr.mxu0 0.0
    %862 = vmatpush1.msra.mxu0 0.0
    %863 = vmatprep.subr.mxu0 0.0
    %864 = vmatpush1.msra.mxu0 0.0
    %865 = vmatprep.subr.mxu0 0.0
    %866 = vmatpush1.msra.mxu0 0.0
    %867 = vmatprep.subr.mxu0 0.0
    %868 = vmatpush1.msra.mxu0 0.0
    %869 = vmatprep.subr.mxu0 0.0
    %870 = vmatpush1.msra.mxu0 0.0
    %871 = vmatprep.subr.mxu0 0.0
    %872 = vmatpush1.msra.mxu0 0.0
    %873 = vmatprep.subr.mxu0 0.0
    %874 = vmatpush1.msra.mxu0 0.0
    %875 = vmatprep.subr.mxu0 0.0
    %876 = vmatpush1.msra.mxu0 0.0
    %877 = vmatprep.subr.mxu0 0.0
    %878 = vmatpush1.msra.mxu0 0.0
    %879 = vmatprep.subr.mxu0 0.0
    %880 = vmatpush1.msra.mxu0 0.0
    %881 = vmatprep.subr.mxu0 0.0
    %882 = vmatpush1.msra.mxu0 0.0
    %883 = vmatprep.subr.mxu0 0.0
    %884 = vmatpush1.msra.mxu0 0.0
    %885 = vmatprep.subr.mxu0 0.0
    %886 = vmatpush1.msra.mxu0 0.0
    %887 = vmatprep.subr.mxu0 0.0
    %888 = vmatpush1.msra.mxu0 0.0
    %889 = vmatprep.subr.mxu0 0.0
    %890 = vmatpush1.msra.mxu0 0.0
    %891 = vmatprep.subr.mxu0 0.0
    %892 = vmatpush1.msra.mxu0 0.0
    %893 = vmatprep.subr.mxu0 0.0
    %894 = vmatpush1.msra.mxu0 0.0
    %895 = vmatprep.subr.mxu0 0.0
    %896 = vmatpush1.msra.mxu0 0.0
    %897 = vmatprep.subr.mxu0 0.0
    %898 = vmatpush1.msra.mxu0 0.0
    %899 = vmatprep.subr.mxu0 0.0
    %900 = vmatpush1.msra.mxu0 0.0
    %901 = vmatprep.subr.mxu0 0.0
    %902 = vmatpush1.msra.mxu0 0.0
    %903 = vmatprep.subr.mxu0 0.0
    %904 = vmatpush1.msra.mxu0 0.0
    %905 = vmatprep.subr.mxu0 0.0
    %906 = vmatpush1.msra.mxu0 0.0
    %907 = vmatprep.subr.mxu0 0.0
    %908 = vmatpush1.msra.mxu0 0.0
    %909 = vmatprep.subr.mxu0 0.0
    %910 = vmatpush1.msra.mxu0 0.0
    %911 = vmatprep.subr.mxu0 0.0
    %912 = vmatpush1.msra.mxu0 0.0
    %913 = vmatprep.subr.mxu0 0.0
    %914 = vmatpush1.msra.mxu0 0.0
    %915 = vmatprep.subr.mxu0 0.0
    %916 = vmatpush1.msra.mxu0 0.0
    %917 = vmatprep.subr.mxu0 0.0
    %918 = vmatpush1.msra.mxu0 0.0
    %919 = vmatprep.mubr.f32.mxu0 0.0
    %920 = vmatmul.mubr.f32.gmra.mrb[0].mxu0 %v853
    %v921 = vpop.f32.mrb[0].mxu0
    %v922 = vadd.f32 0.0, %v921
    %v923 = vpop.f32.mrb[0].mxu0
    %924 = vdwg.mxu0
    %v925 = vld [vmem:[%s7] sm:$0xff]
    %v926 = vld [vmem:[%s7 + $0x8] sm:$0xff]
    %v927 = vld [vmem:[%s7 + $0x10] sm:$0xff]
    %v928 = vld [vmem:[%s7 + $0x18] sm:$0xff]
    %v929 = vld [vmem:[%s8] sm:$0x1]
    %v931 = vlaneseq
    %v932 = vshrl.u32 %v931, 7
    %v933 = vsub.s32 0, %v932
    %v934 = vrot.slane %v929, %v933
    %v937 = vsel %vm139, %v922, 0
    %939 = vmatprep.subr.mxu0 0.0
    %940 = vmatpush1.msra.mxu0 %v925
    %941 = vmatprep.subr.mxu0 0.0
    %942 = vmatpush1.msra.mxu0 %v926
    %943 = vmatprep.subr.mxu0 0.0
    %944 = vmatpush1.msra.mxu0 %v927
    %945 = vmatprep.subr.mxu0 0.0
    %946 = vmatpush1.msra.mxu0 %v928
    %947 = vmatprep.subr.mxu0 0.0
    %948 = vmatpush1.msra.mxu0 0.0
    %949 = vmatprep.subr.mxu0 0.0
    %950 = vmatpush1.msra.mxu0 0.0
    %951 = vmatprep.subr.mxu0 0.0
    %952 = vmatpush1.msra.mxu0 0.0
    %953 = vmatprep.subr.mxu0 0.0
    %954 = vmatpush1.msra.mxu0 0.0
    %955 = vmatprep.subr.mxu0 0.0
    %956 = vmatpush1.msra.mxu0 0.0
    %957 = vmatprep.subr.mxu0 0.0
    %958 = vmatpush1.msra.mxu0 0.0
    %959 = vmatprep.subr.mxu0 0.0
    %960 = vmatpush1.msra.mxu0 0.0
    %961 = vmatprep.subr.mxu0 0.0
    %962 = vmatpush1.msra.mxu0 0.0
    %963 = vmatprep.subr.mxu0 0.0
    %964 = vmatpush1.msra.mxu0 0.0
    %965 = vmatprep.subr.mxu0 0.0
    %966 = vmatpush1.msra.mxu0 0.0
    %967 = vmatprep.subr.mxu0 0.0
    %968 = vmatpush1.msra.mxu0 0.0
    %969 = vmatprep.subr.mxu0 0.0
    %970 = vmatpush1.msra.mxu0 0.0
    %971 = vmatprep.subr.mxu0 0.0
    %972 = vmatpush1.msra.mxu0 0.0
    %973 = vmatprep.subr.mxu0 0.0
    %974 = vmatpush1.msra.mxu0 0.0
    %975 = vmatprep.subr.mxu0 0.0
    %976 = vmatpush1.msra.mxu0 0.0
    %977 = vmatprep.subr.mxu0 0.0
    %978 = vmatpush1.msra.mxu0 0.0
    %979 = vmatprep.subr.mxu0 0.0
    %980 = vmatpush1.msra.mxu0 0.0
    %981 = vmatprep.subr.mxu0 0.0
    %982 = vmatpush1.msra.mxu0 0.0
    %983 = vmatprep.subr.mxu0 0.0
    %984 = vmatpush1.msra.mxu0 0.0
    %985 = vmatprep.subr.mxu0 0.0
    %986 = vmatpush1.msra.mxu0 0.0
    %987 = vmatprep.subr.mxu0 0.0
    %988 = vmatpush1.msra.mxu0 0.0
    %989 = vmatprep.subr.mxu0 0.0
    %990 = vmatpush1.msra.mxu0 0.0
    %991 = vmatprep.subr.mxu0 0.0
    %992 = vmatpush1.msra.mxu0 0.0
    %993 = vmatprep.subr.mxu0 0.0
    %994 = vmatpush1.msra.mxu0 0.0
    %995 = vmatprep.subr.mxu0 0.0
    %996 = vmatpush1.msra.mxu0 0.0
    %997 = vmatprep.subr.mxu0 0.0
    %998 = vmatpush1.msra.mxu0 0.0
    %999 = vmatprep.subr.mxu0 0.0
    %1000 = vmatpush1.msra.mxu0 0.0
    %1001 = vmatprep.subr.mxu0 0.0
    %1002 = vmatpush1.msra.mxu0 0.0
    %1003 = vmatprep.mubr.f32.mxu0 0.0
    %1004 = vmatmul.mubr.f32.gmra.mrb[0].mxu0 %v937
    %v1005 = vpop.f32.mrb[0].mxu0
    %v1006 = vadd.f32 %v934, %v1005
    %v1007 = vpop.f32.mrb[0].mxu0
    %1008 = vdwg.mxu0
    %vm1009 = vcmask 17408
    %1010 = vst.msk [vmem:[#allocation2] sm:$0x3] %vm1009, %v1006
    // Predicated region
    $region38: #{rgcn_forward.1} parent=1 // pred_check
      _
    $region39: #{rgcn_forward.1} parent=1 // pred_check_branch
      %1012 = sbr.rel (0) target = $region41
    $region40: #{rgcn_forward.1} parent=1 // pred_region
      %s1014 = ssub.s32 32, 32
      %1015 = vsyncadd [#allocation3], %s1014
      %s1017 = sshll.u32 [#allocation2], 4
      %s1018 = int_to_ptr.vmem [resolvable:$true] %s1017
      %1020 = dma.vmem_to_hbm [thread:$0]  %s1018, 32, %s9, [#allocation3]
    $region41: #{rgcn_forward.1} parent=1 // pred_fallthru
      _
    // Predicated region
    $region42: #{rgcn_forward.1} parent=1 // pred_check
      _
    $region43: #{rgcn_forward.1} parent=1 // pred_check_branch
      %1022 = sbr.rel (0) target = $region45
    $region44: #{rgcn_forward.1} parent=1 // pred_region
      %1023 = dma.done [#allocation3], 32
    $region45: #{rgcn_forward.1} parent=1 // pred_fallthru
      _
    %1024 = vsyncpa [#allocation3], 1

</llo_original>
